<compile_context>
chip_gen: v6e
topology: v6e:2x2x1
jax: 0.10.0
libtpu: 0.0.40
codegen_flags: <defaults>
</compile_context>

<pallas_src>
import functools

import jax
import jax.numpy as jnp
from jax.experimental import pallas as pl
from jax.experimental.pallas import tpu as pltpu


def _round_up(x, m):
    return (x + m - 1) // m * m


def prepare_bert_output_params(w, b, gamma, beta, matmul_dtype=jnp.bfloat16):
    """One-time parameter transform (call at module init, NOT per forward).

    w: (H, I) nn.Linear weight.
    Returns:
      w_t:    (I_pad, H_pad) matmul_dtype weight, transposed + zero-padded to
              multiples of 128 (lane-dense).
      params: (8, H_pad) f32 packed resident operand:
              row 0 = bias, row 1 = gamma, row 2 = beta,
              row 3 = lane mask (1.0 on true H lanes, 0.0 on padded lanes).
    """
    H, I = w.shape
    I_pad = _round_up(I, 128)
    H_pad = _round_up(H, 128)
    w_t = jnp.pad(w.T.astype(matmul_dtype), ((0, I_pad - I), (0, H_pad - H)))
    params = jnp.zeros((8, H_pad), jnp.float32)
    params = params.at[0, :H].set(b.astype(jnp.float32))
    params = params.at[1, :H].set(gamma.astype(jnp.float32))
    params = params.at[2, :H].set(beta.astype(jnp.float32))
    params = params.at[3, :H].set(1.0)
    return w_t, params


def _make_bert_output_kernel(h_true, eps, mask_padded_lanes):
    """Fused dense + residual-add + LayerNorm kernel body."""
    inv_h = 1.0 / float(h_true)

    def kernel(x_ref, w_ref, p_ref, res_ref, o_ref):
        # x_ref:   (TM, I_pad) activation tile, native dtype; cast to the
        #          matmul dtype here so the HBM stream stays at input width.
        # w_ref:   (I_pad, H_pad) matmul-dtype weight, grid-resident.
        # p_ref:   (8, H_pad) f32 packed bias / gamma / beta / lane-mask.
        # res_ref: (TM, H_pad) residual tile.
        x = x_ref[...].astype(w_ref.dtype)
        h = jnp.dot(x, w_ref[...], preferred_element_type=jnp.float32)
        # Dropout is identity in eval mode. Bias + residual add in f32.
        h = h + p_ref[0:1, :] + res_ref[...].astype(jnp.float32)

        # LayerNorm over the true H lanes. Padded lanes of h are exactly 0
        # (zero-padded weight columns / bias / residual), so the mean is
        # already correct; mask centered values out of the variance.
        mean = jnp.sum(h, axis=-1, keepdims=True) * inv_h
        centered = h - mean
        if mask_padded_lanes:
            centered = centered * p_ref[3:4, :]
        var = jnp.sum(centered * centered, axis=-1, keepdims=True) * inv_h
        normed = centered * jax.lax.rsqrt(var + eps)
        o_ref[...] = (normed * p_ref[1:2, :] + p_ref[2:3, :]).astype(o_ref.dtype)

    return kernel


@functools.partial(jax.jit, static_argnames=("eps", "tile_m"))
def bert_output(hidden_states, input_tensor, w_t, params, eps, *, tile_m=512):
    """hidden_states: [B, S, I], input_tensor: [B, S, H] -> [B, S, H]."""
    B, S, I = hidden_states.shape
    H = input_tensor.shape[-1]
    M = B * S
    I_pad, H_pad = w_t.shape
    out_dtype = input_tensor.dtype  # bf16 upstream -> bf16 output stream

    # Row tiling: multiple of 8, padded (cdiv) rather than asserted; keep at
    # least 2 grid steps so both v7x TensorCores get work on small B*S.
    tile_m = max(8, min(tile_m, _round_up(M, 8)))
    if M > 8:
        tile_m = min(tile_m, _round_up((M + 1) // 2, 8))
    M_pad = _round_up(M, tile_m)
    grid = (M_pad // tile_m,)

    # Activations streamed at native width (cast happens inside the kernel).
    x2 = jnp.pad(hidden_states.reshape(M, I), ((0, M_pad - M), (0, I_pad - I)))
    r2 = jnp.pad(input_tensor.reshape(M, H), ((0, M_pad - M), (0, H_pad - H)))

    e_x = x2.dtype.itemsize
    e_w = w_t.dtype.itemsize
    e_res = r2.dtype.itemsize
    e_out = jnp.dtype(out_dtype).itemsize

    # VMEM budget: double-buffered streams + single-buffered weight + f32
    # temporaries, with headroom. Cap is generation-aware (85% of physical
    # VMEM: 64 MiB on v7x, 128 MiB on v5e/v6e).
    vmem_bytes = (
        2 * tile_m * I_pad * e_x           # x tiles (double-buffered)
        + I_pad * H_pad * e_w              # weight (single-buffered)
        + 2 * tile_m * H_pad * e_res       # residual tiles
        + 2 * tile_m * H_pad * e_out       # output tiles
        + 2 * 8 * H_pad * 4                # packed params
        + 2 * tile_m * H_pad * 4           # f32 compute temporaries headroom
    )
    try:
        vmem_cap = pltpu.get_tpu_info().vmem_capacity_bytes
    except Exception:  # conservative fallback if query unavailable
        vmem_cap = 64 << 20
    vmem_limit = int(max(min(vmem_bytes + (4 << 20), int(0.85 * vmem_cap)),
                         16 << 20))

    cost = pl.CostEstimate(
        flops=2 * M * I * H + 10 * M * H,
        transcendentals=M,
        bytes_accessed=(M_pad * I_pad * e_x + I_pad * H_pad * e_w
                        + M_pad * H_pad * (e_res + e_out) + 8 * H_pad * 4),
    )

    out2 = pl.pallas_call(
        _make_bert_output_kernel(H, float(eps), H_pad != H),
        out_shape=jax.ShapeDtypeStruct((M_pad, H_pad), out_dtype),
        grid_spec=pltpu.PrefetchScalarGridSpec(
            num_scalar_prefetch=0,
            grid=grid,
            in_specs=[
                pl.BlockSpec((tile_m, I_pad), lambda i: (i, 0)),     # x tile
                pl.BlockSpec((I_pad, H_pad), lambda i: (0, 0),
                             pipeline_mode=pl.Buffered(1)),          # weight
                pl.BlockSpec((8, H_pad), lambda i: (0, 0)),          # params
                pl.BlockSpec((tile_m, H_pad), lambda i: (i, 0)),     # residual
            ],
            out_specs=pl.BlockSpec((tile_m, H_pad), lambda i: (i, 0)),
        ),
        compiler_params=pltpu.CompilerParams(
            dimension_semantics=("parallel",),
            vmem_limit_bytes=vmem_limit,
        ),
        cost_estimate=cost,
    )(x2, w_t, params, r2)

    return out2[:M, :H].reshape(B, S, H)


def bert_output_ref_bf16(hidden_states, input_tensor, w, b, gamma, beta, eps):
    """Reference with the same bf16-matmul / f32-accumulate semantics."""
    h = jnp.einsum("bsi,hi->bsh",
                   hidden_states.astype(jnp.bfloat16),
                   w.astype(jnp.bfloat16),
                   preferred_element_type=jnp.float32) + b
    h = h + input_tensor.astype(jnp.float32)
    mean = jnp.mean(h, axis=-1, keepdims=True)
    var = jnp.mean((h - mean) ** 2, axis=-1, keepdims=True)
    out = (h - mean) * jax.lax.rsqrt(var + eps) * gamma + beta
    return out.astype(input_tensor.dtype)


def bert_output_ref_f32(hidden_states, input_tensor, w, b, gamma, beta, eps):
    h = jnp.einsum("bsi,hi->bsh", hidden_states, w) + b
    h = h + input_tensor
    mean = jnp.mean(h, axis=-1, keepdims=True)
    var = jnp.mean((h - mean) ** 2, axis=-1, keepdims=True)
    return (h - mean) * jax.lax.rsqrt(var + eps) * gamma + beta


if __name__ == "__main__":
    # Small shapes consistent with BertOutput:
    #   batch=2, seq=8, intermediate_size=64, hidden_size=32
    B, S, I, H = 2, 8, 64, 32
    eps = 1e-12

    key = jax.random.PRNGKey(0)
    k1, k2, k3, k4, k5, k6 = jax.random.split(key, 6)
    hidden_states = jax.random.normal(k1, (B, S, I), dtype=jnp.float32)
    input_tensor = jax.random.normal(k2, (B, S, H), dtype=jnp.float32)
    # Deterministic synthetic parameters (not a checkpoint):
    w = jax.random.normal(k3, (H, I), dtype=jnp.float32) * 0.02   # Linear weight (out, in)
    b = jax.random.normal(k4, (H,), dtype=jnp.float32) * 0.02     # Linear bias
    gamma = jnp.ones((H,), dtype=jnp.float32) + 0.1 * jax.random.normal(k5, (H,))
    beta = 0.1 * jax.random.normal(k6, (H,), dtype=jnp.float32)

    # One-time parameter prep (in a real model this runs at module init).
    w_t, params = prepare_bert_output_params(w, b, gamma, beta)

    out = bert_output(hidden_states, input_tensor, w_t, params, eps)
    out = jax.block_until_ready(out)
    assert out.shape == (B, S, H)

    # Strict check vs. a reference with identical bf16-matmul semantics.
    ref_bf16 = bert_output_ref_bf16(hidden_states, input_tensor, w, b, gamma, beta, eps)
    assert jnp.allclose(out, ref_bf16, atol=1e-3, rtol=1e-3), "mismatch vs bf16 reference"

    # Sanity check vs. the full-f32 reference (looser: bf16 matmul rounding).
    ref_f32 = bert_output_ref_f32(hidden_states, input_tensor, w, b, gamma, beta, eps)
    assert jnp.allclose(out, ref_f32, atol=5e-2, rtol=5e-2), "mismatch vs f32 reference"

    print("KERNEL_OK")
</pallas_src>

<mosaic_0001>
module attributes {stable_mosaic.version = 11 : i64} {
  func.func @kernel(%arg0: i32, %arg1: memref<8x128xf32, #tpu.memory_space<vmem>>, %arg2: memref<128x128xbf16, #tpu.memory_space<vmem>>, %arg3: memref<8x128xf32, #tpu.memory_space<vmem>>, %arg4: memref<8x128xf32, #tpu.memory_space<vmem>>, %arg5: memref<8x128xf32, #tpu.memory_space<vmem>>) attributes {dimension_semantics = [#tpu.dimension_semantics<parallel>], iteration_bounds = array<i64: 2>, scalar_prefetch = 0 : i64, scratch_operands = 0 : i64, tpu.core_type = #tpu.core_type<tc>, window_params = [{transform_indices = @transform_0, window_bounds = array<i64: 8, 128>}, {pipeline_mode = #tpu.pipeline_mode<synchronous>, transform_indices = @transform_1, window_bounds = array<i64: 128, 128>}, {pipeline_mode = #tpu.pipeline_mode<synchronous>, transform_indices = @transform_2, window_bounds = array<i64: 8, 128>}, {transform_indices = @transform_3, window_bounds = array<i64: 8, 128>}, {transform_indices = @transform_4, window_bounds = array<i64: 8, 128>}]} {
    %c0 = arith.constant 0 : index
    %c0_0 = arith.constant 0 : index
    %0 = vector.load %arg1[%c0, %c0_0] : memref<8x128xf32, #tpu.memory_space<vmem>>, vector<8x128xf32>
    %1 = arith.truncf %0 : vector<8x128xf32> to vector<8x128xbf16>
    %c0_1 = arith.constant 0 : index
    %c0_2 = arith.constant 0 : index
    %2 = vector.load %arg2[%c0_1, %c0_2] : memref<128x128xbf16, #tpu.memory_space<vmem>>, vector<128x128xbf16>
    %cst = arith.constant dense<0.000000e+00> : vector<8x128xf32>
    %3 = tpu.matmul %1, %2, %cst {dimension_numbers = #tpu.dot_dimension_numbers<[1], [0], [0], [1], [0, 0, 1, 1], [], []>} : vector<8x128xbf16>, vector<128x128xbf16>, vector<8x128xf32> -> vector<8x128xf32>
    %c0_3 = arith.constant 0 : index
    %c0_4 = arith.constant 0 : index
    %4 = vector.load %arg3[%c0_3, %c0_4] : memref<8x128xf32, #tpu.memory_space<vmem>>, vector<1x128xf32>
    %5 = vector.broadcast %4 : vector<1x128xf32> to vector<8x128xf32>
    %6 = arith.addf %3, %5 : vector<8x128xf32>
    %c0_5 = arith.constant 0 : index
    %c0_6 = arith.constant 0 : index
    %7 = vector.load %arg4[%c0_5, %c0_6] : memref<8x128xf32, #tpu.memory_space<vmem>>, vector<8x128xf32>
    %8 = arith.addf %6, %7 : vector<8x128xf32>
    %cst_7 = arith.constant dense<0.000000e+00> : vector<8xf32>
    %9 = vector.multi_reduction <add>, %8, %cst_7 [1] : vector<8x128xf32> to vector<8xf32>
    %10 = vector.shape_cast %9 : vector<8xf32> to vector<8x1xf32>
    %cst_8 = arith.constant 3.125000e-02 : f32
    %11 = vector.broadcast %cst_8 : f32 to vector<8x1xf32>
    %12 = arith.mulf %10, %11 : vector<8x1xf32>
    %13 = vector.broadcast %12 : vector<8x1xf32> to vector<8x128xf32>
    %14 = arith.subf %8, %13 : vector<8x128xf32>
    %c3 = arith.constant 3 : index
    %c0_9 = arith.constant 0 : index
    %15 = vector.load %arg3[%c3, %c0_9] : memref<8x128xf32, #tpu.memory_space<vmem>>, vector<1x128xf32>
    %16 = vector.broadcast %15 : vector<1x128xf32> to vector<8x128xf32>
    %17 = arith.mulf %14, %16 : vector<8x128xf32>
    %18 = arith.mulf %17, %17 : vector<8x128xf32>
    %cst_10 = arith.constant dense<0.000000e+00> : vector<8xf32>
    %19 = vector.multi_reduction <add>, %18, %cst_10 [1] : vector<8x128xf32> to vector<8xf32>
    %20 = vector.shape_cast %19 : vector<8xf32> to vector<8x1xf32>
    %cst_11 = arith.constant 3.125000e-02 : f32
    %21 = vector.broadcast %cst_11 : f32 to vector<8x1xf32>
    %22 = arith.mulf %20, %21 : vector<8x1xf32>
    %cst_12 = arith.constant 9.99999996E-13 : f32
    %23 = vector.broadcast %cst_12 : f32 to vector<8x1xf32>
    %24 = arith.addf %22, %23 : vector<8x1xf32>
    %25 = math.rsqrt %24 : vector<8x1xf32>
    %26 = vector.broadcast %25 : vector<8x1xf32> to vector<8x128xf32>
    %27 = arith.mulf %17, %26 : vector<8x128xf32>
    %c1 = arith.constant 1 : index
    %c0_13 = arith.constant 0 : index
    %28 = vector.load %arg3[%c1, %c0_13] : memref<8x128xf32, #tpu.memory_space<vmem>>, vector<1x128xf32>
    %29 = vector.broadcast %28 : vector<1x128xf32> to vector<8x128xf32>
    %30 = arith.mulf %27, %29 : vector<8x128xf32>
    %c2 = arith.constant 2 : index
    %c0_14 = arith.constant 0 : index
    %31 = vector.load %arg3[%c2, %c0_14] : memref<8x128xf32, #tpu.memory_space<vmem>>, vector<1x128xf32>
    %32 = vector.broadcast %31 : vector<1x128xf32> to vector<8x128xf32>
    %33 = arith.addf %30, %32 : vector<8x128xf32>
    %c0_15 = arith.constant 0 : index
    %c0_16 = arith.constant 0 : index
    %34 = vector.load %arg5[%c0_15, %c0_16] : memref<8x128xf32, #tpu.memory_space<vmem>>, vector<8x128xf32>
    tpu.vector_store %arg5[%c0_15, %c0_16], %33 {strides = array<i32>} : memref<8x128xf32, #tpu.memory_space<vmem>>, vector<8x128xf32>,
    return
  }
  func.func @transform_0(%arg0: i32) -> (i32, i32) {
    %c0_i32 = arith.constant 0 : i32
    %c0_i32_0 = arith.constant 0 : i32
    return %arg0, %c0_i32 : i32, i32
  }
  func.func @transform_1(%arg0: i32) -> (i32, i32) {
    %c0_i32 = arith.constant 0 : i32
    %c0_i32_0 = arith.constant 0 : i32
    %c0_i32_1 = arith.constant 0 : i32
    return %c0_i32, %c0_i32_0 : i32, i32
  }
  func.func @transform_2(%arg0: i32) -> (i32, i32) {
    %c0_i32 = arith.constant 0 : i32
    %c0_i32_0 = arith.constant 0 : i32
    %c0_i32_1 = arith.constant 0 : i32
    return %c0_i32, %c0_i32_0 : i32, i32
  }
  func.func @transform_3(%arg0: i32) -> (i32, i32) {
    %c0_i32 = arith.constant 0 : i32
    %c0_i32_0 = arith.constant 0 : i32
    return %arg0, %c0_i32 : i32, i32
  }
  func.func @transform_4(%arg0: i32) -> (i32, i32) {
    %c0_i32 = arith.constant 0 : i32
    %c0_i32_0 = arith.constant 0 : i32
    return %arg0, %c0_i32 : i32, i32
  }
}

</mosaic_0001>

<llo_original>
// kernel: bert_output.1
$region0: #{bert_output.1}
  #allocation0 [shape = 'u32[]', space=smem, size = 0x4, offset = 0x4, fixed_abs, tag = 'smem constant byte address 0x4 - core index']
  #allocation1 [shape = 'u32[144,128]{1,0:T(1,128)}', space=vmem, size = 0x12000, scoped, tag = 'internal scratch']
  %s0 = inlined_call_operand.vmem [shape: f32[16,128], index: 0, kind: input, shape index: {}]
  %s1 = inlined_call_operand.vmem [shape: bf16[128,128], index: 1, kind: input, shape index: {}]
  %s2 = inlined_call_operand.vmem [shape: f32[8,128], index: 2, kind: input, shape index: {}]
  %s3 = inlined_call_operand.vmem [shape: f32[16,128], index: 3, kind: input, shape index: {}]
  %s4 = inlined_call_operand.vmem [shape: f32[16,128], index: 4, kind: output, shape index: {}]
  %s5 = sld [smem:[#allocation0]]
  $region49: #{bert_output.1} parent=0
    _
  %s7 = ssub.s32 1, %s5
  %s8 = scalar_select 0, %s7, %s5
  loop: start=0, step=1, limit=4
  $region2: #{bert_output.1} parent=0 // loop_pre_header
    _
  $region3: #{bert_output.1} parent=0 // loop_header
    %s10 = sphi 0, %s14
    %p11 = scmp.ge.s32.totalorder %s10, 4
    %s20 = sphi 0, %s22
    %s23 = sphi 0, %s20
    %s24 = sphi 0, %s23
    %s40 = sphi 0, %s24
    %s44 = sphi 0, %s44
    %s46 = sphi 0, %s44
    %s47 = sphi 0, %s46
    %s61 = sphi 0, %s47
    %s65 = sphi 0, %s65
    %s67 = sphi 0, %s65
    %s68 = sphi 0, %s67
    %s82 = sphi 0, %s68
    %s88 = sphi 0, %s90
    %s91 = sphi 0, %s88
    %s92 = sphi 0, %s91
    %s108 = sphi 0, %s92
    %s114 = sphi 0, %s116
    %s117 = sphi 0, %s114
    %s118 = sphi 0, %s117
    %s134 = sphi 0, %s118
  $region4: #{bert_output.1} parent=0 // loop_header_branch
    %13 = sbr.rel (%p11) target = $region8
  $region5: #{bert_output.1} parent=0 // loop_body
    %s15 = ssub.s32 %s10, 1
    %s16 = ssub.s32 %s10, 2
    %s17 = sadd.s32 %s10, 1
    %s18 = ssub.s32 %s10, %s17
    %p19 = scmp.eq.s32.totalorder %s18, 0
    %s21 = sadd.s32 %s20, 1
    %s22 = scalar_select %p19, %s20, %s21
    %p25 = pneg %p19
    %p26 = scmp.eq.s32.totalorder %s10, 1
    %p27 = por %p25, %p26
    %p28 = scmp.ne.s32.totalorder %s20, %s23
    %p29 = scmp.eq.s32.totalorder %s10, 0
    %p30 = por %p28, %p29
    %p31 = scmp.ne.s32.totalorder %s20, %s23
    %p32 = scmp.eq.s32.totalorder %s15, 1
    %p33 = por %p31, %p32
    %p34 = scmp.ne.s32.totalorder %s23, %s24
    %p35 = scmp.eq.s32.totalorder %s15, 0
    %p36 = por %p34, %p35
    %p37 = scmp.ne.s32.totalorder %s23, %s24
    %p38 = scmp.eq.s32.totalorder %s16, 1
    %p39 = por %p37, %p38
    %p41 = scmp.ne.s32.totalorder %s24, %s40
    %p42 = scmp.eq.s32.totalorder %s16, 0
    %p43 = por %p41, %p42
    %s45 = sadd.s32 %s44, 1
    %p48 = scmp.eq.s32.totalorder %s10, 1
    %p49 = scmp.ne.s32.totalorder %s44, %s46
    %p50 = scmp.eq.s32.totalorder %s10, 0
    %p51 = por %p49, %p50
    %p52 = scmp.ne.s32.totalorder %s44, %s46
    %p53 = scmp.eq.s32.totalorder %s15, 1
    %p54 = por %p52, %p53
    %p55 = scmp.ne.s32.totalorder %s46, %s47
    %p56 = scmp.eq.s32.totalorder %s15, 0
    %p57 = por %p55, %p56
    %p58 = scmp.ne.s32.totalorder %s46, %s47
    %p59 = scmp.eq.s32.totalorder %s16, 1
    %p60 = por %p58, %p59
    %p62 = scmp.ne.s32.totalorder %s47, %s61
    %p63 = scmp.eq.s32.totalorder %s16, 0
    %p64 = por %p62, %p63
    %s66 = sadd.s32 %s65, 1
    %p69 = scmp.eq.s32.totalorder %s10, 1
    %p70 = scmp.ne.s32.totalorder %s65, %s67
    %p71 = scmp.eq.s32.totalorder %s10, 0
    %p72 = por %p70, %p71
    %p73 = scmp.ne.s32.totalorder %s65, %s67
    %p74 = scmp.eq.s32.totalorder %s15, 1
    %p75 = por %p73, %p74
    %p76 = scmp.ne.s32.totalorder %s67, %s68
    %p77 = scmp.eq.s32.totalorder %s15, 0
    %p78 = por %p76, %p77
    %p79 = scmp.ne.s32.totalorder %s67, %s68
    %p80 = scmp.eq.s32.totalorder %s16, 1
    %p81 = por %p79, %p80
    %p83 = scmp.ne.s32.totalorder %s68, %s82
    %p84 = scmp.eq.s32.totalorder %s16, 0
    %p85 = por %p83, %p84
    %s86 = ssub.s32 %s10, %s17
    %p87 = scmp.eq.s32.totalorder %s86, 0
    %s89 = sadd.s32 %s88, 1
    %s90 = scalar_select %p87, %s88, %s89
    %p93 = pneg %p87
    %p94 = scmp.eq.s32.totalorder %s10, 1
    %p95 = por %p93, %p94
    %p96 = scmp.ne.s32.totalorder %s88, %s91
    %p97 = scmp.eq.s32.totalorder %s10, 0
    %p98 = por %p96, %p97
    %p99 = scmp.ne.s32.totalorder %s88, %s91
    %p100 = scmp.eq.s32.totalorder %s15, 1
    %p101 = por %p99, %p100
    %p102 = scmp.ne.s32.totalorder %s91, %s92
    %p103 = scmp.eq.s32.totalorder %s15, 0
    %p104 = por %p102, %p103
    %p105 = scmp.ne.s32.totalorder %s91, %s92
    %p106 = scmp.eq.s32.totalorder %s16, 1
    %p107 = por %p105, %p106
    %p109 = scmp.ne.s32.totalorder %s92, %s108
    %p110 = scmp.eq.s32.totalorder %s16, 0
    %p111 = por %p109, %p110
    %s112 = ssub.s32 %s10, %s17
    %p113 = scmp.eq.s32.totalorder %s112, 0
    %s115 = sadd.s32 %s114, 1
    %s116 = scalar_select %p113, %s114, %s115
    %p119 = pneg %p113
    %p120 = scmp.eq.s32.totalorder %s10, 1
    %p121 = por %p119, %p120
    %p122 = scmp.ne.s32.totalorder %s114, %s117
    %p123 = scmp.eq.s32.totalorder %s10, 0
    %p124 = por %p122, %p123
    %p125 = scmp.ne.s32.totalorder %s114, %s117
    %p126 = scmp.eq.s32.totalorder %s15, 1
    %p127 = por %p125, %p126
    %p128 = scmp.ne.s32.totalorder %s117, %s118
    %p129 = scmp.eq.s32.totalorder %s15, 0
    %p130 = por %p128, %p129
    %p131 = scmp.ne.s32.totalorder %s117, %s118
    %p132 = scmp.eq.s32.totalorder %s16, 1
    %p133 = por %p131, %p132
    %p135 = scmp.ne.s32.totalorder %s118, %s134
    %p136 = scmp.eq.s32.totalorder %s16, 0
    %p137 = por %p135, %p136
    %p138 = scmp.le.s32.totalorder 1, %s10
    %p139 = scmp.lt.s32.totalorder %s10, 3
    %p140 = pnand %p138, %p139
    %p141 = pneg %p140
    // Predicated region
    $region9: #{bert_output.1} parent=5 // pred_check
      _
    $region10: #{bert_output.1} parent=5 // pred_check_branch
      %143 = sbr.rel (%p140) target = $region12
    $region11: #{bert_output.1} parent=5 // pred_region
      %s144 = ssub.s32 %s10, 1
      // Predicated region
      $region13: #{bert_output.1} parent=11 // pred_check
        %p145 = pneg %p57
      $region14: #{bert_output.1} parent=11 // pred_check_branch
        %147 = sbr.rel (%p145) target = $region16
      $region15: #{bert_output.1} parent=11 // pred_region
        _
      $region16: #{bert_output.1} parent=11 // pred_fallthru
        _
      // Predicated region
      $region17: #{bert_output.1} parent=11 // pred_check
        %p148 = pneg %p78
      $region18: #{bert_output.1} parent=11 // pred_check_branch
        %150 = sbr.rel (%p148) target = $region20
      $region19: #{bert_output.1} parent=11 // pred_region
        _
      $region20: #{bert_output.1} parent=11 // pred_fallthru
        _
    $region12: #{bert_output.1} parent=5 // pred_fallthru
      _
    %p151 = scmp.lt.s32.totalorder %s10, 2
    // Predicated region
    $region21: #{bert_output.1} parent=5 // pred_check
      %p152 = pneg %p151
    $region22: #{bert_output.1} parent=5 // pred_check_branch
      %154 = sbr.rel (%p152) target = $region24
    $region23: #{bert_output.1} parent=5 // pred_region
      // Predicated region
      $region25: #{bert_output.1} parent=23 // pred_check
        %p155 = pneg %p30
      $region26: #{bert_output.1} parent=23 // pred_check_branch
        %157 = sbr.rel (%p155) target = $region28
      $region27: #{bert_output.1} parent=23 // pred_region
        %p158 = scmp.lt.s32.totalorder %s10, 1
        %s159 = scalar_select %p158, %s10, 1
        %s160 = smul.addr %s159, 8
        %s161 = scalar_lea.vmem %s0, %s160
      $region28: #{bert_output.1} parent=23 // pred_fallthru
        _
      // Predicated region
      $region29: #{bert_output.1} parent=23 // pred_check
        %p162 = pneg %p98
      $region30: #{bert_output.1} parent=23 // pred_check_branch
        %164 = sbr.rel (%p162) target = $region32
      $region31: #{bert_output.1} parent=23 // pred_region
        %p165 = scmp.lt.s32.totalorder %s10, 1
        %s166 = scalar_select %p165, %s10, 1
        %s167 = smul.addr %s166, 8
        %s168 = scalar_lea.vmem %s3, %s167
      $region32: #{bert_output.1} parent=23 // pred_fallthru
        _
    $region24: #{bert_output.1} parent=5 // pred_fallthru
      _
    %p169 = scmp.le.s32.totalorder 1, %s10
    %p170 = scmp.lt.s32.totalorder %s10, 3
    %p171 = pnand %p169, %p170
    %p172 = pneg %p171
    // Predicated region
    $region33: #{bert_output.1} parent=5 // pred_check
      _
    $region34: #{bert_output.1} parent=5 // pred_check_branch
      %174 = sbr.rel (%p171) target = $region36
    $region35: #{bert_output.1} parent=5 // pred_region
      %s175 = ssub.s32 %s10, 1
      %p176 = scmp.lt.s32.totalorder %s15, 1
      %s177 = scalar_select %p176, %s15, 1
      %s178 = smul.addr %s177, 8
      %s179 = scalar_lea.vmem %s0, %s178
      %p180 = pneg %p36
      %p181 = pneg %p33
      %p182 = pneg %p57
      %p183 = pneg %p54
      %p184 = pneg %p78
      %p185 = pneg %p75
      %p186 = scmp.lt.s32.totalorder %s15, 1
      %s187 = scalar_select %p186, %s15, 1
      %s188 = smul.addr %s187, 8
      %s189 = scalar_lea.vmem %s3, %s188
      %p190 = pneg %p104
      %p191 = pneg %p101
      %p192 = pneg %p130
      %p193 = pneg %p127
      %p194 = scmp.lt.s32.totalorder %s15, 1
      %s195 = scalar_select %p194, %s15, 1
      %s196 = smul.addr %s195, 8
      %s197 = scalar_lea.vmem %s4, %s196
      %p198 = scmp.lt.s32.totalorder %s15, 1
      %s199 = scalar_select %p198, %s15, 1
      %s200 = smul.addr %s199, 8
      %s201 = scalar_lea.vmem %s0, %s200
      %p202 = scmp.lt.s32.totalorder %s15, 1
      %s203 = scalar_select %p202, %s15, 1
      %s204 = smul.addr %s203, 8
      %s205 = scalar_lea.vmem %s3, %s204
      %p206 = scmp.lt.s32.totalorder %s15, 1
      %s207 = scalar_select %p206, %s15, 1
      %s208 = smul.addr %s207, 8
      %s209 = scalar_lea.vmem %s4, %s208
      %v211 = vld [vmem:[%s201] sm:$0xff]
      %v212 = vpack.c.bf16 %v211, %v211
      %v213 = vld [vmem:[%s1] sm:$0xf]
      %v214 = vld [vmem:[%s1 + $0x4] sm:$0xf]
      %v215 = vld [vmem:[%s1 + $0x8] sm:$0xf]
      %v216 = vld [vmem:[%s1 + $0xc] sm:$0xf]
      %v217 = vld [vmem:[%s1 + $0x10] sm:$0xf]
      %v218 = vld [vmem:[%s1 + $0x14] sm:$0xf]
      %v219 = vld [vmem:[%s1 + $0x18] sm:$0xf]
      %v220 = vld [vmem:[%s1 + $0x1c] sm:$0xf]
      %v221 = vld [vmem:[%s1 + $0x20] sm:$0xf]
      %v222 = vld [vmem:[%s1 + $0x24] sm:$0xf]
      %v223 = vld [vmem:[%s1 + $0x28] sm:$0xf]
      %v224 = vld [vmem:[%s1 + $0x2c] sm:$0xf]
      %v225 = vld [vmem:[%s1 + $0x30] sm:$0xf]
      %v226 = vld [vmem:[%s1 + $0x34] sm:$0xf]
      %v227 = vld [vmem:[%s1 + $0x38] sm:$0xf]
      %v228 = vld [vmem:[%s1 + $0x3c] sm:$0xf]
      %v229 = vld [vmem:[%s2] sm:$0x1]
      %v230 = vlaneseq
      %v231 = vshrl.u32 %v230, 7
      %v232 = vsub.s32 0, %v231
      %v233 = vrot.slane %v229, %v232
      %v250 = vunpack.c.l.b16 %v213
      %v251 = vunpack.c.l.b16 %v214
      %v252 = vunpack.c.l.b16 %v215
      %v253 = vunpack.c.l.b16 %v216
      %v254 = vunpack.c.l.b16 %v217
      %v255 = vunpack.c.l.b16 %v218
      %v256 = vunpack.c.l.b16 %v219
      %v257 = vunpack.c.l.b16 %v220
      %v258 = vunpack.c.l.b16 %v221
      %v259 = vunpack.c.l.b16 %v222
      %v260 = vunpack.c.l.b16 %v223
      %v261 = vunpack.c.l.b16 %v224
      %v262 = vunpack.c.l.b16 %v225
      %v263 = vunpack.c.l.b16 %v226
      %v264 = vunpack.c.l.b16 %v227
      %v265 = vunpack.c.l.b16 %v228
      %v266 = vpack.c.b16 %v251, %v250
      %v267 = vpack.c.b16 %v253, %v252
      %v268 = vpack.c.b16 %v255, %v254
      %v269 = vpack.c.b16 %v257, %v256
      %v270 = vpack.c.b16 %v259, %v258
      %v271 = vpack.c.b16 %v261, %v260
      %v272 = vpack.c.b16 %v263, %v262
      %v273 = vpack.c.b16 %v265, %v264
      %282 = vmatprep.subr.bf16.mxu0 0
      %283 = vmatpush1.bf16.msra.mxu0 %v273
      %284 = vmatprep.subr.bf16.mxu0 0
      %285 = vmatpush1.bf16.msra.mxu0 %v272
      %286 = vmatprep.subr.bf16.mxu0 0
      %287 = vmatpush1.bf16.msra.mxu0 %v271
      %288 = vmatprep.subr.bf16.mxu0 0
      %289 = vmatpush1.bf16.msra.mxu0 %v270
      %290 = vmatprep.subr.bf16.mxu0 0
      %291 = vmatpush1.bf16.msra.mxu0 %v269
      %292 = vmatprep.subr.bf16.mxu0 0
      %293 = vmatpush1.bf16.msra.mxu0 %v268
      %294 = vmatprep.subr.bf16.mxu0 0
      %295 = vmatpush1.bf16.msra.mxu0 %v267
      %296 = vmatprep.subr.bf16.mxu0 0
      %297 = vmatpush1.bf16.msra.mxu0 %v266
      %298 = vmatprep.subr.bf16.mxu0 0
      %299 = vmatpush2.bf16.msra.mxu0 0
      %300 = vmatprep.subr.bf16.mxu0 0
      %301 = vmatpush2.bf16.msra.mxu0 0
      %302 = vmatprep.subr.bf16.mxu0 0
      %303 = vmatpush2.bf16.msra.mxu0 0
      %304 = vmatprep.subr.bf16.mxu0 0
      %305 = vmatpush2.bf16.msra.mxu0 0
      %306 = vmatprep.subr.bf16.mxu0 0
      %307 = vmatpush2.bf16.msra.mxu0 0
      %308 = vmatprep.subr.bf16.mxu0 0
      %309 = vmatpush2.bf16.msra.mxu0 0
      %310 = vmatprep.subr.bf16.mxu0 0
      %311 = vmatpush2.bf16.msra.mxu0 0
      %312 = vmatprep.subr.bf16.mxu0 0
      %313 = vmatpush2.bf16.msra.mxu0 0
      %314 = vmatprep.mubr.bf16.mxu0 0
      %315 = vmatmul.mubr.bf16.gmra.mxu0 %v212
      %v316 = vpop.f32.mrf.mxu0
      %v317 = vadd.f32 %v233, %v316
      %v318 = vpop.f32.mrf.mxu0
      %v319 = vpop.f32.mrf.mxu0
      %v320 = vpop.f32.mrf.mxu0
      %321 = vdwg.mxu0
      %v322 = vld [vmem:[%s205] sm:$0xff]
      %v323 = vadd.f32 %v317, %v322
      %324 = vadd.xlane.f32.xlu0 %v323
      %v325 = vpop.xlane.xlu0 %324
      %v326 = vmul.f32 %v325, 0.03125
      %v327 = vsub.f32 %v323, %v326
      %v328 = vld [vmem:[%s2 + $0x3] sm:$0x1]
      %v329 = vlaneseq
      %v330 = vshrl.u32 %v329, 7
      %v331 = vsub.s32 0, %v330
      %v332 = vrot.slane %v328, %v331
      %v333 = vmul.f32 %v327, %v332
      %v334 = vmul.f32 %v333, %v333
      %335 = vadd.xlane.f32.xlu0 %v334
      %v336 = vpop.xlane.xlu0 %335
      %v337 = vmul.f32 %v336, 0.03125
      %v338 = vadd.f32 %v337, 1e-12
      %v339 = vrsqrt.pop %v338
      %v340 = vmul.f32 %v333, %v339
      %v341 = vld [vmem:[%s2 + $0x1] sm:$0x1]
      %v342 = vlaneseq
      %v343 = vshrl.u32 %v342, 7
      %v344 = vsub.s32 0, %v343
      %v345 = vrot.slane %v341, %v344
      %v346 = vmul.f32 %v340, %v345
      %v347 = vld [vmem:[%s2 + $0x2] sm:$0x1]
      %v348 = vlaneseq
      %v349 = vshrl.u32 %v348, 7
      %v350 = vsub.s32 0, %v349
      %v351 = vrot.slane %v347, %v350
      %v352 = vadd.f32 %v346, %v351
      %353 = vst [vmem:[%s209] sm:$0xff] %v352
      %p354 = scmp.lt.s32.totalorder %s15, 1
      %s355 = scalar_select %p354, %s15, 1
      %s356 = smul.addr %s355, 8
      %s357 = scalar_lea.vmem %s4, %s356
      // Predicated region
      $region37: #{bert_output.1} parent=35 // pred_check
        %p358 = pneg %p127
      $region38: #{bert_output.1} parent=35 // pred_check_branch
        %360 = sbr.rel (%p358) target = $region40
      $region39: #{bert_output.1} parent=35 // pred_region
        _
      $region40: #{bert_output.1} parent=35 // pred_fallthru
        _
    $region36: #{bert_output.1} parent=5 // pred_fallthru
      _
    %p361 = scmp.le.s32.totalorder 2, %s10
    // Predicated region
    $region41: #{bert_output.1} parent=5 // pred_check
      %p362 = pneg %p361
    $region42: #{bert_output.1} parent=5 // pred_check_branch
      %364 = sbr.rel (%p362) target = $region44
    $region43: #{bert_output.1} parent=5 // pred_region
      %s365 = ssub.s32 %s10, 2
      // Predicated region
      $region45: #{bert_output.1} parent=43 // pred_check
        %p366 = pneg %p133
      $region46: #{bert_output.1} parent=43 // pred_check_branch
        %368 = sbr.rel (%p366) target = $region48
      $region47: #{bert_output.1} parent=43 // pred_region
        %p369 = scmp.lt.s32.totalorder %s16, 1
        %s370 = scalar_select %p369, %s16, 1
        %s371 = smul.addr %s370, 8
        %s372 = scalar_lea.vmem %s4, %s371
      $region48: #{bert_output.1} parent=43 // pred_fallthru
        _
    $region44: #{bert_output.1} parent=5 // pred_fallthru
      _
  $region6: #{bert_output.1} parent=0 // loop_footer
    %s14 = sadd.s32 1, %s10
  $region7: #{bert_output.1} parent=0 // loop_footer_branch
    %9 = sbr.rel target = $region3
  $region8: #{bert_output.1} parent=0 // loop_exit
    _

</llo_original>
